<compile_context>
chip_gen: v7x
topology: tpu7x:2x2x1
jax: 0.10.0
libtpu: 0.0.40
codegen_flags: <defaults>
</compile_context>

<pallas_src>
import jax
import jax.numpy as jnp
from jax.experimental import pallas as pl
from jax.experimental.pallas import tpu as pltpu


# ---------------------------------------------------------------------------
# Kernel 1: one GCN layer   H = relu( (A_hat @ X) @ W + b )
#   grid = (row tiles i, K tiles k); f32 (tm, F) accumulator resident over k.
# ---------------------------------------------------------------------------
def gcn_layer_kernel(a_ref, x_ref, w_ref, b_ref, h_ref, acc_ref):
    k = pl.program_id(1)

    @pl.when(k == 0)
    def _():
        acc_ref[...] = jnp.zeros_like(acc_ref)

    # Aggregation of this K tile: (tm, tk) @ (tk, F) -> (tm, F),
    # bf16 operands on the MXU, f32 accumulation.
    acc_ref[...] += jnp.dot(a_ref[...], x_ref[...],
                            preferred_element_type=jnp.float32)

    @pl.when(k == pl.num_programs(1) - 1)
    def _():
        # Feature transform runs ONCE per row tile: (tm, F) @ (F, H) -> (tm, H).
        agg = acc_ref[...].astype(jnp.bfloat16)
        hw = jnp.dot(agg, w_ref[...], preferred_element_type=jnp.float32)
        h_ref[...] = jnp.maximum(hw + b_ref[...], 0.0).astype(h_ref.dtype)


def gcn_layer(a_hat_bf16, x_bf16, w_bf16, b_f32, *, tm=128, tk=128):
    n = a_hat_bf16.shape[0]
    f_dim = x_bf16.shape[1]
    h_dim = w_bf16.shape[1]
    grid = (n // tm, n // tk)
    return pl.pallas_call(
        gcn_layer_kernel,
        out_shape=jax.ShapeDtypeStruct((n, h_dim), jnp.bfloat16),
        grid_spec=pltpu.PrefetchScalarGridSpec(
            num_scalar_prefetch=0,
            grid=grid,
            in_specs=[
                pl.BlockSpec((tm, tk), lambda i, k: (i, k)),        # A_hat tile
                pl.BlockSpec((tk, f_dim), lambda i, k: (k, 0)),     # X rows of K tile
                pl.BlockSpec((f_dim, h_dim), lambda i, k: (0, 0)),  # W (resident)
                pl.BlockSpec((1, h_dim), lambda i, k: (0, 0)),      # bias (resident)
            ],
            out_specs=pl.BlockSpec((tm, h_dim), lambda i, k: (i, 0)),
            scratch_shapes=[pltpu.VMEM((tm, f_dim), jnp.float32)],
        ),
        compiler_params=pltpu.CompilerParams(
            dimension_semantics=("parallel", "arbitrary")),
    )(a_hat_bf16, x_bf16, w_bf16, b_f32)


# ---------------------------------------------------------------------------
# Kernel 2: pooled = pool @ H ; logits = pooled @ Wf + bf ; log_softmax
#   grid = (K tiles over nodes,); f32 (G, H) accumulator resident across k.
# ---------------------------------------------------------------------------
def pool_fc_kernel(pool_ref, h_ref, wf_ref, bf_ref, out_ref, acc_ref):
    k = pl.program_id(0)

    @pl.when(k == 0)
    def _():
        acc_ref[...] = jnp.zeros_like(acc_ref)

    acc_ref[...] += jnp.dot(pool_ref[...], h_ref[...],
                            preferred_element_type=jnp.float32)

    @pl.when(k == pl.num_programs(0) - 1)
    def _():
        logits = jnp.dot(acc_ref[...], wf_ref[...],
                         preferred_element_type=jnp.float32) + bf_ref[...]
        m = jnp.max(logits, axis=1, keepdims=True)
        z = logits - m
        lse = jnp.log(jnp.sum(jnp.exp(z), axis=1, keepdims=True))
        out_ref[...] = z - lse


def pool_fc_logsoftmax(pool_bf16, h_bf16, wf_f32, bf_f32, *, tk=128):
    g, n = pool_bf16.shape
    h_dim = h_bf16.shape[1]
    c = wf_f32.shape[1]
    return pl.pallas_call(
        pool_fc_kernel,
        out_shape=jax.ShapeDtypeStruct((g, c), jnp.float32),
        grid_spec=pltpu.PrefetchScalarGridSpec(
            num_scalar_prefetch=0,
            grid=(n // tk,),
            in_specs=[
                pl.BlockSpec((g, tk), lambda k: (0, k)),        # pool cols of K tile
                pl.BlockSpec((tk, h_dim), lambda k: (k, 0)),    # H rows of K tile
                pl.BlockSpec((h_dim, c), lambda k: (0, 0)),     # Wf (resident)
                pl.BlockSpec((1, c), lambda k: (0, 0)),         # bf (resident)
            ],
            out_specs=pl.BlockSpec((g, c), lambda k: (0, 0)),
            scratch_shapes=[pltpu.VMEM((g, h_dim), jnp.float32)],
        ),
        compiler_params=pltpu.CompilerParams(
            dimension_semantics=("arbitrary",)),
    )(pool_bf16, h_bf16, wf_f32, bf_f32)


# ---------------------------------------------------------------------------
# Top-level forward: pad N to the tile size, cast MXU operands to bf16.
# ---------------------------------------------------------------------------
def gcn_forward(a_hat, x, w1, b1, w2, b2, pool, wf, bf, *, tile=128):
    n = x.shape[0]
    n_pad = max(tile, ((n + tile - 1) // tile) * tile)

    a_p = jnp.zeros((n_pad, n_pad), jnp.bfloat16).at[:n, :n].set(
        a_hat.astype(jnp.bfloat16))
    x_p = jnp.zeros((n_pad, x.shape[1]), jnp.bfloat16).at[:n, :].set(
        x.astype(jnp.bfloat16))
    pool_p = jnp.zeros((pool.shape[0], n_pad), jnp.bfloat16).at[:, :n].set(
        pool.astype(jnp.bfloat16))

    h = gcn_layer(a_p, x_p, w1.astype(jnp.bfloat16), b1, tm=tile, tk=tile)
    h = gcn_layer(a_p, h, w2.astype(jnp.bfloat16), b2, tm=tile, tk=tile)
    return pool_fc_logsoftmax(pool_p, h, wf, bf, tk=tile)


# ---------------------------------------------------------------------------
# Plain-JAX glue: dense normalized adjacency + mean-pool matrix
# ---------------------------------------------------------------------------
def build_normalized_adjacency(edge_index, num_nodes):
    """D^-1/2 (A + I) D^-1/2 with A[dst, src] = 1 for each edge (src, dst)."""
    src, dst = edge_index[0], edge_index[1]
    A = jnp.zeros((num_nodes, num_nodes), jnp.float32)
    A = A.at[dst, src].set(1.0)
    A = A + jnp.eye(num_nodes, dtype=jnp.float32)          # self-loops
    deg = jnp.sum(A, axis=1)
    dinv = jnp.where(deg > 0, 1.0 / jnp.sqrt(deg), 0.0)
    return dinv[:, None] * A * dinv[None, :]


def build_mean_pool_matrix(batch, num_graphs):
    onehot = (batch[None, :] == jnp.arange(num_graphs)[:, None]).astype(jnp.float32)
    counts = jnp.maximum(jnp.sum(onehot, axis=1, keepdims=True), 1.0)
    return onehot / counts                                   # (G, N)


# ---------------------------------------------------------------------------
# Main
# ---------------------------------------------------------------------------
if __name__ == "__main__":
    input_dim, hidden_dim, output_dim = 8, 32, 4
    num_graphs = 2
    nodes_per_graph = 8
    N = num_graphs * nodes_per_graph                         # 16 nodes total

    key = jax.random.PRNGKey(0)
    k_x, k_w1, k_w2, k_wf = jax.random.split(key, 4)

    # data.x : node features
    x = jax.random.normal(k_x, (N, input_dim), jnp.float32)

    # data.edge_index : bidirectional ring within each graph (shape (2, E))
    src_list, dst_list = [], []
    for g in range(num_graphs):
        base = g * nodes_per_graph
        for i in range(nodes_per_graph):
            a = base + i
            b = base + (i + 1) % nodes_per_graph
            src_list += [a, b]
            dst_list += [b, a]
    edge_index = jnp.array([src_list, dst_list], dtype=jnp.int32)   # (2, 32)

    # data.batch : graph assignment per node
    batch = jnp.repeat(jnp.arange(num_graphs, dtype=jnp.int32), nodes_per_graph)

    # Deterministic parameter init (Glorot-ish), biases zero.
    w1 = jax.random.normal(k_w1, (input_dim, hidden_dim), jnp.float32) / jnp.sqrt(input_dim)
    b1 = jnp.zeros((1, hidden_dim), jnp.float32)
    w2 = jax.random.normal(k_w2, (hidden_dim, hidden_dim), jnp.float32) / jnp.sqrt(hidden_dim)
    b2 = jnp.zeros((1, hidden_dim), jnp.float32)
    wf = jax.random.normal(k_wf, (hidden_dim, output_dim), jnp.float32) / jnp.sqrt(hidden_dim)
    bf = jnp.zeros((1, output_dim), jnp.float32)

    # Dense graph operators (glue).
    a_hat = build_normalized_adjacency(edge_index, N)         # (N, N)
    pool = build_mean_pool_matrix(batch, num_graphs)          # (G, N)

    out = gcn_forward(a_hat, x, w1, b1, w2, b2, pool, wf, bf)
    out = jax.block_until_ready(out)

    # Pure-JAX f32 reference (kernel uses bf16 MXU operands -> loose tol).
    h = jnp.maximum(a_hat @ (x @ w1) + b1, 0.0)
    h = jnp.maximum(a_hat @ (h @ w2) + b2, 0.0)
    logits = (pool @ h) @ wf + bf
    ref = jax.nn.log_softmax(logits, axis=1)
    assert out.shape == (num_graphs, output_dim)
    assert jnp.allclose(out, ref, atol=5e-2, rtol=5e-2), "mismatch vs JAX reference"

    print("KERNEL_OK")
</pallas_src>

<mosaic_0001>
module attributes {stable_mosaic.version = 11 : i64} {
  func.func @gcn_layer_kernel(%arg0: i32, %arg1: i32, %arg2: memref<128x128xbf16, #tpu.memory_space<vmem>>, %arg3: memref<128x8xbf16, #tpu.memory_space<vmem>>, %arg4: memref<8x32xbf16, #tpu.memory_space<vmem>>, %arg5: memref<1x32xf32, #tpu.memory_space<vmem>>, %arg6: memref<128x32xbf16, #tpu.memory_space<vmem>>, %arg7: memref<128x8xf32, #tpu.memory_space<vmem>>) attributes {dimension_semantics = [#tpu.dimension_semantics<parallel>, #tpu.dimension_semantics<arbitrary>], iteration_bounds = array<i64: 1, 1>, scalar_prefetch = 0 : i64, scratch_operands = 1 : i64, tpu.core_type = #tpu.core_type<tc>, window_params = [{transform_indices = @transform_0, window_bounds = array<i64: 128, 128>}, {transform_indices = @transform_1, window_bounds = array<i64: 128, 8>}, {pipeline_mode = #tpu.pipeline_mode<synchronous>, transform_indices = @transform_2, window_bounds = array<i64: 8, 32>}, {pipeline_mode = #tpu.pipeline_mode<synchronous>, transform_indices = @transform_3, window_bounds = array<i64: 1, 32>}, {transform_indices = @transform_4, window_bounds = array<i64: 128, 32>}]} {
    %c0_i32 = arith.constant 0 : i32
    %0 = arith.cmpi eq, %arg1, %c0_i32 : i32
    %1 = arith.extui %0 : i1 to i32
    %c0_i32_0 = arith.constant 0 : i32
    %2 = arith.cmpi ne, %1, %c0_i32_0 : i32
    scf.if %2 {
      %cst_10 = arith.constant 0.000000e+00 : f32
      %12 = vector.broadcast %cst_10 : f32 to vector<128x8xf32>
      %c0_11 = arith.constant 0 : index
      %c0_12 = arith.constant 0 : index
      %13 = vector.load %arg7[%c0_11, %c0_12] : memref<128x8xf32, #tpu.memory_space<vmem>>, vector<128x8xf32>
      tpu.vector_store %arg7[%c0_11, %c0_12], %12 {strides = array<i32>} : memref<128x8xf32, #tpu.memory_space<vmem>>, vector<128x8xf32>,
    } else {
    }
    %c0 = arith.constant 0 : index
    %c0_1 = arith.constant 0 : index
    %3 = vector.load %arg7[%c0, %c0_1] : memref<128x8xf32, #tpu.memory_space<vmem>>, vector<128x8xf32>
    %c0_2 = arith.constant 0 : index
    %c0_3 = arith.constant 0 : index
    %4 = vector.load %arg2[%c0_2, %c0_3] : memref<128x128xbf16, #tpu.memory_space<vmem>>, vector<128x128xbf16>
    %c0_4 = arith.constant 0 : index
    %c0_5 = arith.constant 0 : index
    %5 = vector.load %arg3[%c0_4, %c0_5] : memref<128x8xbf16, #tpu.memory_space<vmem>>, vector<128x8xbf16>
    %cst = arith.constant dense<0.000000e+00> : vector<128x8xf32>
    %6 = tpu.matmul %4, %5, %cst {dimension_numbers = #tpu.dot_dimension_numbers<[1], [0], [0], [1], [0, 0, 1, 1], [], []>} : vector<128x128xbf16>, vector<128x8xbf16>, vector<128x8xf32> -> vector<128x8xf32>
    %7 = arith.addf %3, %6 : vector<128x8xf32>
    %c0_6 = arith.constant 0 : index
    %c0_7 = arith.constant 0 : index
    %8 = vector.load %arg7[%c0_6, %c0_7] : memref<128x8xf32, #tpu.memory_space<vmem>>, vector<128x8xf32>
    tpu.vector_store %arg7[%c0_6, %c0_7], %7 {strides = array<i32>} : memref<128x8xf32, #tpu.memory_space<vmem>>, vector<128x8xf32>,
    %c0_i32_8 = arith.constant 0 : i32
    %9 = arith.cmpi eq, %arg1, %c0_i32_8 : i32
    %10 = arith.extui %9 : i1 to i32
    %c0_i32_9 = arith.constant 0 : i32
    %11 = arith.cmpi ne, %10, %c0_i32_9 : i32
    scf.if %11 {
      %c0_10 = arith.constant 0 : index
      %c0_11 = arith.constant 0 : index
      %12 = vector.load %arg7[%c0_10, %c0_11] : memref<128x8xf32, #tpu.memory_space<vmem>>, vector<128x8xf32>
      %13 = arith.truncf %12 : vector<128x8xf32> to vector<128x8xbf16>
      %c0_12 = arith.constant 0 : index
      %c0_13 = arith.constant 0 : index
      %14 = vector.load %arg4[%c0_12, %c0_13] : memref<8x32xbf16, #tpu.memory_space<vmem>>, vector<8x32xbf16>
      %cst_14 = arith.constant dense<0.000000e+00> : vector<128x32xf32>
      %15 = tpu.matmul %13, %14, %cst_14 {dimension_numbers = #tpu.dot_dimension_numbers<[1], [0], [0], [1], [0, 0, 1, 1], [], []>} : vector<128x8xbf16>, vector<8x32xbf16>, vector<128x32xf32> -> vector<128x32xf32>
      %c0_15 = arith.constant 0 : index
      %c0_16 = arith.constant 0 : index
      %16 = vector.load %arg5[%c0_15, %c0_16] : memref<1x32xf32, #tpu.memory_space<vmem>>, vector<1x32xf32>
      %17 = vector.broadcast %16 : vector<1x32xf32> to vector<128x32xf32>
      %18 = arith.addf %15, %17 : vector<128x32xf32>
      %cst_17 = arith.constant 0.000000e+00 : f32
      %19 = vector.broadcast %cst_17 : f32 to vector<128x32xf32>
      %20 = arith.maximumf %18, %19 : vector<128x32xf32>
      %21 = arith.truncf %20 : vector<128x32xf32> to vector<128x32xbf16>
      %c0_18 = arith.constant 0 : index
      %c0_19 = arith.constant 0 : index
      %22 = vector.load %arg6[%c0_18, %c0_19] : memref<128x32xbf16, #tpu.memory_space<vmem>>, vector<128x32xbf16>
      tpu.vector_store %arg6[%c0_18, %c0_19], %21 {strides = array<i32>} : memref<128x32xbf16, #tpu.memory_space<vmem>>, vector<128x32xbf16>,
    } else {
    }
    return
  }
  func.func @transform_0(%arg0: i32, %arg1: i32) -> (i32, i32) {
    %c0_i32 = arith.constant 0 : i32
    return %arg0, %arg1 : i32, i32
  }
  func.func @transform_1(%arg0: i32, %arg1: i32) -> (i32, i32) {
    %c0_i32 = arith.constant 0 : i32
    %c0_i32_0 = arith.constant 0 : i32
    return %arg1, %c0_i32 : i32, i32
  }
  func.func @transform_2(%arg0: i32, %arg1: i32) -> (i32, i32) {
    %c0_i32 = arith.constant 0 : i32
    %c0_i32_0 = arith.constant 0 : i32
    %c0_i32_1 = arith.constant 0 : i32
    return %c0_i32, %c0_i32_0 : i32, i32
  }
  func.func @transform_3(%arg0: i32, %arg1: i32) -> (i32, i32) {
    %c0_i32 = arith.constant 0 : i32
    %c0_i32_0 = arith.constant 0 : i32
    %c0_i32_1 = arith.constant 0 : i32
    return %c0_i32, %c0_i32_0 : i32, i32
  }
  func.func @transform_4(%arg0: i32, %arg1: i32) -> (i32, i32) {
    %c0_i32 = arith.constant 0 : i32
    %c0_i32_0 = arith.constant 0 : i32
    return %arg0, %c0_i32 : i32, i32
  }
}

</mosaic_0001>

<llo_original>
// kernel: tpu_custom_call.1
$region0: #{tpu_custom_call.1}
  #allocation0 [shape = 'u32[]', space=smem, size = 0x4, offset = 0x4, fixed_abs, tag = 'smem constant byte address 0x4 - core index']
  #allocation1 [shape = 'u32[144,128]{1,0:T(1,128)}', space=vmem, size = 0x12000, scoped, tag = 'internal scratch']
  #allocation2 [shape = 'f32[128,8]{1,0:T(8,128)}', space=vmem, size = 0x10000, scoped, tag = 'scratch operand']
  %s0 = inlined_call_operand.vmem [shape: bf16[128,128], index: 0, kind: input, shape index: {}]
  %s1 = inlined_call_operand.vmem [shape: bf16[128,8], index: 1, kind: input, shape index: {}]
  %s2 = inlined_call_operand.vmem [shape: bf16[8,32], index: 2, kind: input, shape index: {}]
  %s3 = inlined_call_operand.vmem [shape: f32[1,32], index: 3, kind: input, shape index: {}]
  %s4 = inlined_call_operand.vmem [shape: bf16[128,32], index: 4, kind: output, shape index: {}]
  %s5 = sld [smem:[#allocation0]]
  $region34: #{tpu_custom_call.1} parent=0
    _
  %s7 = ssub.s32 1, %s5
  %s8 = scalar_select 0, %s7, %s5
  // Predicated region
  $region2: #{tpu_custom_call.1} parent=0 // pred_check
    _
  $region3: #{tpu_custom_call.1} parent=0 // pred_check_branch
    %10 = sbr.rel (0) target = $region5
  $region4: #{tpu_custom_call.1} parent=0 // pred_region
    _
  $region5: #{tpu_custom_call.1} parent=0 // pred_fallthru
    _
  // Predicated region
  $region6: #{tpu_custom_call.1} parent=0 // pred_check
    _
  $region7: #{tpu_custom_call.1} parent=0 // pred_check_branch
    %12 = sbr.rel (0) target = $region9
  $region8: #{tpu_custom_call.1} parent=0 // pred_region
    _
  $region9: #{tpu_custom_call.1} parent=0 // pred_fallthru
    _
  // Predicated region
  $region10: #{tpu_custom_call.1} parent=0 // pred_check
    _
  $region11: #{tpu_custom_call.1} parent=0 // pred_check_branch
    %14 = sbr.rel (0) target = $region13
  $region12: #{tpu_custom_call.1} parent=0 // pred_region
    _
  $region13: #{tpu_custom_call.1} parent=0 // pred_fallthru
    _
  // Predicated region
  $region14: #{tpu_custom_call.1} parent=0 // pred_check
    _
  $region15: #{tpu_custom_call.1} parent=0 // pred_check_branch
    %16 = sbr.rel (0) target = $region17
  $region16: #{tpu_custom_call.1} parent=0 // pred_region
    _
  $region17: #{tpu_custom_call.1} parent=0 // pred_fallthru
    _
  %p18 = scmp.eq.s32.totalorder 0, 0
  // Predicated region
  $region18: #{tpu_custom_call.1} parent=0 // pred_check
    %p19 = pneg %p18
  $region19: #{tpu_custom_call.1} parent=0 // pred_check_branch
    %21 = sbr.rel (%p19) target = $region21
  $region20: #{tpu_custom_call.1} parent=0 // pred_region
    %vm22 = vcmask 64512
    %23 = vst.msk [vmem:[#allocation2] sm:$0xff] %vm22, 0.0
    %24 = vst.msk [vmem:[#allocation2 + $0x8] sm:$0xff] %vm22, 0.0
    %25 = vst.msk [vmem:[#allocation2 + $0x10] sm:$0xff] %vm22, 0.0
    %26 = vst.msk [vmem:[#allocation2 + $0x18] sm:$0xff] %vm22, 0.0
    %27 = vst.msk [vmem:[#allocation2 + $0x20] sm:$0xff] %vm22, 0.0
    %28 = vst.msk [vmem:[#allocation2 + $0x28] sm:$0xff] %vm22, 0.0
    %29 = vst.msk [vmem:[#allocation2 + $0x30] sm:$0xff] %vm22, 0.0
    %30 = vst.msk [vmem:[#allocation2 + $0x38] sm:$0xff] %vm22, 0.0
    %31 = vst.msk [vmem:[#allocation2 + $0x40] sm:$0xff] %vm22, 0.0
    %32 = vst.msk [vmem:[#allocation2 + $0x48] sm:$0xff] %vm22, 0.0
    %33 = vst.msk [vmem:[#allocation2 + $0x50] sm:$0xff] %vm22, 0.0
    %34 = vst.msk [vmem:[#allocation2 + $0x58] sm:$0xff] %vm22, 0.0
    %35 = vst.msk [vmem:[#allocation2 + $0x60] sm:$0xff] %vm22, 0.0
    %36 = vst.msk [vmem:[#allocation2 + $0x68] sm:$0xff] %vm22, 0.0
    %37 = vst.msk [vmem:[#allocation2 + $0x70] sm:$0xff] %vm22, 0.0
    %38 = vst.msk [vmem:[#allocation2 + $0x78] sm:$0xff] %vm22, 0.0
  $region21: #{tpu_custom_call.1} parent=0 // pred_fallthru
    _
  %v39 = vld [vmem:[#allocation2] sm:$0xff]
  %v40 = vld [vmem:[#allocation2 + $0x8] sm:$0xff]
  %v41 = vld [vmem:[#allocation2 + $0x10] sm:$0xff]
  %v42 = vld [vmem:[#allocation2 + $0x18] sm:$0xff]
  %v43 = vld [vmem:[#allocation2 + $0x20] sm:$0xff]
  %v44 = vld [vmem:[#allocation2 + $0x28] sm:$0xff]
  %v45 = vld [vmem:[#allocation2 + $0x30] sm:$0xff]
  %v46 = vld [vmem:[#allocation2 + $0x38] sm:$0xff]
  %v47 = vld [vmem:[#allocation2 + $0x40] sm:$0xff]
  %v48 = vld [vmem:[#allocation2 + $0x48] sm:$0xff]
  %v49 = vld [vmem:[#allocation2 + $0x50] sm:$0xff]
  %v50 = vld [vmem:[#allocation2 + $0x58] sm:$0xff]
  %v51 = vld [vmem:[#allocation2 + $0x60] sm:$0xff]
  %v52 = vld [vmem:[#allocation2 + $0x68] sm:$0xff]
  %v53 = vld [vmem:[#allocation2 + $0x70] sm:$0xff]
  %v54 = vld [vmem:[#allocation2 + $0x78] sm:$0xff]
  %v55 = vld [vmem:[%s0] sm:$0xf]
  %v56 = vld [vmem:[%s0 + $0x4] sm:$0xf]
  %v57 = vld [vmem:[%s0 + $0x8] sm:$0xf]
  %v58 = vld [vmem:[%s0 + $0xc] sm:$0xf]
  %v59 = vld [vmem:[%s0 + $0x10] sm:$0xf]
  %v60 = vld [vmem:[%s0 + $0x14] sm:$0xf]
  %v61 = vld [vmem:[%s0 + $0x18] sm:$0xf]
  %v62 = vld [vmem:[%s0 + $0x1c] sm:$0xf]
  %v63 = vld [vmem:[%s0 + $0x20] sm:$0xf]
  %v64 = vld [vmem:[%s0 + $0x24] sm:$0xf]
  %v65 = vld [vmem:[%s0 + $0x28] sm:$0xf]
  %v66 = vld [vmem:[%s0 + $0x2c] sm:$0xf]
  %v67 = vld [vmem:[%s0 + $0x30] sm:$0xf]
  %v68 = vld [vmem:[%s0 + $0x34] sm:$0xf]
  %v69 = vld [vmem:[%s0 + $0x38] sm:$0xf]
  %v70 = vld [vmem:[%s0 + $0x3c] sm:$0xf]
  %v71 = vld [vmem:[%s1] sm:$0xf]
  %v72 = vld [vmem:[%s1 + $0x4] sm:$0xf]
  %v73 = vld [vmem:[%s1 + $0x8] sm:$0xf]
  %v74 = vld [vmem:[%s1 + $0xc] sm:$0xf]
  %v75 = vld [vmem:[%s1 + $0x10] sm:$0xf]
  %v76 = vld [vmem:[%s1 + $0x14] sm:$0xf]
  %v77 = vld [vmem:[%s1 + $0x18] sm:$0xf]
  %v78 = vld [vmem:[%s1 + $0x1c] sm:$0xf]
  %v79 = vld [vmem:[%s1 + $0x20] sm:$0xf]
  %v80 = vld [vmem:[%s1 + $0x24] sm:$0xf]
  %v81 = vld [vmem:[%s1 + $0x28] sm:$0xf]
  %v82 = vld [vmem:[%s1 + $0x2c] sm:$0xf]
  %v83 = vld [vmem:[%s1 + $0x30] sm:$0xf]
  %v84 = vld [vmem:[%s1 + $0x34] sm:$0xf]
  %v85 = vld [vmem:[%s1 + $0x38] sm:$0xf]
  %v86 = vld [vmem:[%s1 + $0x3c] sm:$0xf]
  %v103 = vunpack.c.l.b16 %v55
  %v104 = vunpack.c.l.b16 %v56
  %v105 = vunpack.c.l.b16 %v57
  %v106 = vunpack.c.l.b16 %v58
  %v107 = vunpack.c.l.b16 %v59
  %v108 = vunpack.c.l.b16 %v60
  %v109 = vunpack.c.l.b16 %v61
  %v110 = vunpack.c.l.b16 %v62
  %v111 = vunpack.c.l.b16 %v63
  %v112 = vunpack.c.l.b16 %v64
  %v113 = vunpack.c.l.b16 %v65
  %v114 = vunpack.c.l.b16 %v66
  %v115 = vunpack.c.l.b16 %v67
  %v116 = vunpack.c.l.b16 %v68
  %v117 = vunpack.c.l.b16 %v69
  %v118 = vunpack.c.l.b16 %v70
  %v119 = vpack.c.b16 %v104, %v103
  %v120 = vpack.c.b16 %v106, %v105
  %v121 = vpack.c.b16 %v108, %v107
  %v122 = vpack.c.b16 %v110, %v109
  %v123 = vpack.c.b16 %v112, %v111
  %v124 = vpack.c.b16 %v114, %v113
  %v125 = vpack.c.b16 %v116, %v115
  %v126 = vpack.c.b16 %v118, %v117
  %v151 = vunpack.c.l.b16 %v71
  %v152 = vunpack.c.l.b16 %v72
  %v153 = vunpack.c.l.b16 %v73
  %v154 = vunpack.c.l.b16 %v74
  %v155 = vunpack.c.l.b16 %v75
  %v156 = vunpack.c.l.b16 %v76
  %v157 = vunpack.c.l.b16 %v77
  %v158 = vunpack.c.l.b16 %v78
  %v159 = vunpack.c.l.b16 %v79
  %v160 = vunpack.c.l.b16 %v80
  %v161 = vunpack.c.l.b16 %v81
  %v162 = vunpack.c.l.b16 %v82
  %v163 = vunpack.c.l.b16 %v83
  %v164 = vunpack.c.l.b16 %v84
  %v165 = vunpack.c.l.b16 %v85
  %v166 = vunpack.c.l.b16 %v86
  %v167 = vpack.c.b16 %v152, %v151
  %v168 = vpack.c.b16 %v154, %v153
  %v169 = vpack.c.b16 %v156, %v155
  %v170 = vpack.c.b16 %v158, %v157
  %v171 = vpack.c.b16 %v160, %v159
  %v172 = vpack.c.b16 %v162, %v161
  %v173 = vpack.c.b16 %v164, %v163
  %v174 = vpack.c.b16 %v166, %v165
  %183 = vmatprep.subr.bf16.mxu0 0
  %184 = vmatpush1.bf16.msra.mxu0 %v167
  %185 = vmatprep.subr.bf16.mxu0 0
  %186 = vmatpush1.bf16.msra.mxu0 %v168
  %187 = vmatprep.subr.bf16.mxu0 0
  %188 = vmatpush1.bf16.msra.mxu0 %v169
  %189 = vmatprep.subr.bf16.mxu0 0
  %190 = vmatpush1.bf16.msra.mxu0 %v170
  %191 = vmatprep.subr.bf16.mxu0 0
  %192 = vmatpush1.bf16.msra.mxu0 %v171
  %193 = vmatprep.subr.bf16.mxu0 0
  %194 = vmatpush1.bf16.msra.mxu0 %v172
  %195 = vmatprep.subr.bf16.mxu0 0
  %196 = vmatpush1.bf16.msra.mxu0 %v173
  %197 = vmatprep.subr.bf16.mxu0 0
  %198 = vmatpush1.bf16.msra.mxu0 %v174
  %199 = vmatprep.subr.bf16.mxu0 0
  %200 = vmatpush1.bf16.msra.mxu0 0
  %201 = vmatprep.subr.bf16.mxu0 0
  %202 = vmatpush1.bf16.msra.mxu0 0
  %203 = vmatprep.subr.bf16.mxu0 0
  %204 = vmatpush1.bf16.msra.mxu0 0
  %205 = vmatprep.subr.bf16.mxu0 0
  %206 = vmatpush1.bf16.msra.mxu0 0
  %207 = vmatprep.subr.bf16.mxu0 0
  %208 = vmatpush1.bf16.msra.mxu0 0
  %209 = vmatprep.subr.bf16.mxu0 0
  %210 = vmatpush1.bf16.msra.mxu0 0
  %211 = vmatprep.subr.bf16.mxu0 0
  %212 = vmatpush1.bf16.msra.mxu0 0
  %213 = vmatprep.subr.bf16.mxu0 0
  %214 = vmatpush1.bf16.msra.mxu0 0
  %215 = vmatprep.mubr.bf16.mxu0 0
  %216 = vmatmul.mubr.bf16.gmra.mrb[0].mxu0 %v119
  %v217 = vpop.f32.mrb[0].mxu0
  %v218 = vadd.f32 0.0, %v217
  %v219 = vpop.f32.mrb[0].mxu0
  %v220 = vpop.f32.mrb[0].mxu0
  %v221 = vadd.f32 0.0, %v220
  %v222 = vpop.f32.mrb[0].mxu0
  %223 = vmatprep.mubr.bf16.mxu0 0
  %224 = vmatmul.mubr.bf16.gmra.mrb[0].mxu0 %v120
  %v225 = vpop.f32.mrb[0].mxu0
  %v226 = vadd.f32 0.0, %v225
  %v227 = vpop.f32.mrb[0].mxu0
  %v228 = vpop.f32.mrb[0].mxu0
  %v229 = vadd.f32 0.0, %v228
  %v230 = vpop.f32.mrb[0].mxu0
  %231 = vmatprep.mubr.bf16.mxu0 0
  %232 = vmatmul.mubr.bf16.gmra.mrb[0].mxu0 %v121
  %v233 = vpop.f32.mrb[0].mxu0
  %v234 = vadd.f32 0.0, %v233
  %v235 = vpop.f32.mrb[0].mxu0
  %v236 = vpop.f32.mrb[0].mxu0
  %v237 = vadd.f32 0.0, %v236
  %v238 = vpop.f32.mrb[0].mxu0
  %239 = vmatprep.mubr.bf16.mxu0 0
  %240 = vmatmul.mubr.bf16.gmra.mrb[0].mxu0 %v122
  %v241 = vpop.f32.mrb[0].mxu0
  %v242 = vadd.f32 0.0, %v241
  %v243 = vpop.f32.mrb[0].mxu0
  %v244 = vpop.f32.mrb[0].mxu0
  %v245 = vadd.f32 0.0, %v244
  %v246 = vpop.f32.mrb[0].mxu0
  %247 = vmatprep.mubr.bf16.mxu0 0
  %248 = vmatmul.mubr.bf16.gmra.mrb[0].mxu0 %v123
  %v249 = vpop.f32.mrb[0].mxu0
  %v250 = vadd.f32 0.0, %v249
  %v251 = vpop.f32.mrb[0].mxu0
  %v252 = vpop.f32.mrb[0].mxu0
  %v253 = vadd.f32 0.0, %v252
  %v254 = vpop.f32.mrb[0].mxu0
  %255 = vmatprep.mubr.bf16.mxu0 0
  %256 = vmatmul.mubr.bf16.gmra.mrb[0].mxu0 %v124
  %v257 = vpop.f32.mrb[0].mxu0
  %v258 = vadd.f32 0.0, %v257
  %v259 = vpop.f32.mrb[0].mxu0
  %v260 = vpop.f32.mrb[0].mxu0
  %v261 = vadd.f32 0.0, %v260
  %v262 = vpop.f32.mrb[0].mxu0
  %263 = vmatprep.mubr.bf16.mxu0 0
  %264 = vmatmul.mubr.bf16.gmra.mrb[0].mxu0 %v125
  %v265 = vpop.f32.mrb[0].mxu0
  %v266 = vadd.f32 0.0, %v265
  %v267 = vpop.f32.mrb[0].mxu0
  %v268 = vpop.f32.mrb[0].mxu0
  %v269 = vadd.f32 0.0, %v268
  %v270 = vpop.f32.mrb[0].mxu0
  %271 = vmatprep.mubr.bf16.mxu0 0
  %272 = vmatmul.mubr.bf16.gmra.mrb[0].mxu0 %v126
  %v273 = vpop.f32.mrb[0].mxu0
  %v274 = vadd.f32 0.0, %v273
  %v275 = vpop.f32.mrb[0].mxu0
  %v276 = vpop.f32.mrb[0].mxu0
  %v277 = vadd.f32 0.0, %v276
  %v278 = vpop.f32.mrb[0].mxu0
  %279 = vdwg.mxu0
  %v280 = vadd.f32 %v39, %v218
  %v281 = vadd.f32 %v40, %v221
  %v282 = vadd.f32 %v41, %v226
  %v283 = vadd.f32 %v42, %v229
  %v284 = vadd.f32 %v43, %v234
  %v285 = vadd.f32 %v44, %v237
  %v286 = vadd.f32 %v45, %v242
  %v287 = vadd.f32 %v46, %v245
  %v288 = vadd.f32 %v47, %v250
  %v289 = vadd.f32 %v48, %v253
  %v290 = vadd.f32 %v49, %v258
  %v291 = vadd.f32 %v50, %v261
  %v292 = vadd.f32 %v51, %v266
  %v293 = vadd.f32 %v52, %v269
  %v294 = vadd.f32 %v53, %v274
  %v295 = vadd.f32 %v54, %v277
  %vm296 = vcmask 64512
  %297 = vst.msk [vmem:[#allocation2] sm:$0xff] %vm296, %v280
  %298 = vst.msk [vmem:[#allocation2 + $0x8] sm:$0xff] %vm296, %v281
  %299 = vst.msk [vmem:[#allocation2 + $0x10] sm:$0xff] %vm296, %v282
  %300 = vst.msk [vmem:[#allocation2 + $0x18] sm:$0xff] %vm296, %v283
  %301 = vst.msk [vmem:[#allocation2 + $0x20] sm:$0xff] %vm296, %v284
  %302 = vst.msk [vmem:[#allocation2 + $0x28] sm:$0xff] %vm296, %v285
  %303 = vst.msk [vmem:[#allocation2 + $0x30] sm:$0xff] %vm296, %v286
  %304 = vst.msk [vmem:[#allocation2 + $0x38] sm:$0xff] %vm296, %v287
  %305 = vst.msk [vmem:[#allocation2 + $0x40] sm:$0xff] %vm296, %v288
  %306 = vst.msk [vmem:[#allocation2 + $0x48] sm:$0xff] %vm296, %v289
  %307 = vst.msk [vmem:[#allocation2 + $0x50] sm:$0xff] %vm296, %v290
  %308 = vst.msk [vmem:[#allocation2 + $0x58] sm:$0xff] %vm296, %v291
  %309 = vst.msk [vmem:[#allocation2 + $0x60] sm:$0xff] %vm296, %v292
  %310 = vst.msk [vmem:[#allocation2 + $0x68] sm:$0xff] %vm296, %v293
  %311 = vst.msk [vmem:[#allocation2 + $0x70] sm:$0xff] %vm296, %v294
  %312 = vst.msk [vmem:[#allocation2 + $0x78] sm:$0xff] %vm296, %v295
  // Predicated region
  $region22: #{tpu_custom_call.1} parent=0 // pred_check
    %p313 = pneg %p18
  $region23: #{tpu_custom_call.1} parent=0 // pred_check_branch
    %315 = sbr.rel (%p313) target = $region25
  $region24: #{tpu_custom_call.1} parent=0 // pred_region
    %v316 = vld [vmem:[#allocation2] sm:$0xff]
    %v317 = vld [vmem:[#allocation2 + $0x8] sm:$0xff]
    %v318 = vld [vmem:[#allocation2 + $0x10] sm:$0xff]
    %v319 = vld [vmem:[#allocation2 + $0x18] sm:$0xff]
    %v320 = vld [vmem:[#allocation2 + $0x20] sm:$0xff]
    %v321 = vld [vmem:[#allocation2 + $0x28] sm:$0xff]
    %v322 = vld [vmem:[#allocation2 + $0x30] sm:$0xff]
    %v323 = vld [vmem:[#allocation2 + $0x38] sm:$0xff]
    %v324 = vld [vmem:[#allocation2 + $0x40] sm:$0xff]
    %v325 = vld [vmem:[#allocation2 + $0x48] sm:$0xff]
    %v326 = vld [vmem:[#allocation2 + $0x50] sm:$0xff]
    %v327 = vld [vmem:[#allocation2 + $0x58] sm:$0xff]
    %v328 = vld [vmem:[#allocation2 + $0x60] sm:$0xff]
    %v329 = vld [vmem:[#allocation2 + $0x68] sm:$0xff]
    %v330 = vld [vmem:[#allocation2 + $0x70] sm:$0xff]
    %v331 = vld [vmem:[#allocation2 + $0x78] sm:$0xff]
    %v332 = vpack.c.bf16 %v317, %v316
    %v333 = vpack.c.bf16 %v319, %v318
    %v334 = vpack.c.bf16 %v321, %v320
    %v335 = vpack.c.bf16 %v323, %v322
    %v336 = vpack.c.bf16 %v325, %v324
    %v337 = vpack.c.bf16 %v327, %v326
    %v338 = vpack.c.bf16 %v329, %v328
    %v339 = vpack.c.bf16 %v331, %v330
    %v340 = vld [vmem:[%s2] sm:$0xf]
    %v341 = vld [vmem:[%s3] sm:$0x1]
    %v343 = vlaneseq
    %v344 = vshrl.u32 %v343, 7
    %v345 = vsub.s32 0, %v344
    %v346 = vrot.slane %v341, %v345
    %v349 = vsel %vm296, %v332, 0
    %v352 = vsel %vm296, %v333, 0
    %v355 = vsel %vm296, %v334, 0
    %v358 = vsel %vm296, %v335, 0
    %v361 = vsel %vm296, %v336, 0
    %v364 = vsel %vm296, %v337, 0
    %v367 = vsel %vm296, %v338, 0
    %v370 = vsel %vm296, %v339, 0
    %vm372 = vcmask 1043456
    %v374 = vsel %vm372, %v340, 0
    %376 = vmatprep.subr.bf16.mxu0 0
    %377 = vmatpush1.bf16.msra.mxu0 %v374
    %378 = vmatprep.subr.bf16.mxu0 0
    %379 = vmatpush1.bf16.msra.mxu0 0
    %380 = vmatprep.subr.bf16.mxu0 0
    %381 = vmatpush1.bf16.msra.mxu0 0
    %382 = vmatprep.subr.bf16.mxu0 0
    %383 = vmatpush1.bf16.msra.mxu0 0
    %384 = vmatprep.subr.bf16.mxu0 0
    %385 = vmatpush1.bf16.msra.mxu0 0
    %386 = vmatprep.subr.bf16.mxu0 0
    %387 = vmatpush1.bf16.msra.mxu0 0
    %388 = vmatprep.subr.bf16.mxu0 0
    %389 = vmatpush1.bf16.msra.mxu0 0
    %390 = vmatprep.subr.bf16.mxu0 0
    %391 = vmatpush1.bf16.msra.mxu0 0
    %392 = vmatprep.subr.bf16.mxu0 0
    %393 = vmatpush1.bf16.msra.mxu0 0
    %394 = vmatprep.subr.bf16.mxu0 0
    %395 = vmatpush1.bf16.msra.mxu0 0
    %396 = vmatprep.subr.bf16.mxu0 0
    %397 = vmatpush1.bf16.msra.mxu0 0
    %398 = vmatprep.subr.bf16.mxu0 0
    %399 = vmatpush1.bf16.msra.mxu0 0
    %400 = vmatprep.subr.bf16.mxu0 0
    %401 = vmatpush1.bf16.msra.mxu0 0
    %402 = vmatprep.subr.bf16.mxu0 0
    %403 = vmatpush1.bf16.msra.mxu0 0
    %404 = vmatprep.subr.bf16.mxu0 0
    %405 = vmatpush1.bf16.msra.mxu0 0
    %406 = vmatprep.subr.bf16.mxu0 0
    %407 = vmatpush1.bf16.msra.mxu0 0
    %408 = vmatprep.mubr.bf16.mxu0 0
    %409 = vmatmul.mubr.bf16.gmra.mrb[0].mxu0 %v349
    %v410 = vpop.f32.mrb[0].mxu0
    %v411 = vadd.f32 %v346, %v410
    %v412 = vpop.f32.mrb[0].mxu0
    %v413 = vpop.f32.mrb[0].mxu0
    %v414 = vadd.f32 %v346, %v413
    %v415 = vpop.f32.mrb[0].mxu0
    %416 = vmatprep.mubr.bf16.mxu0 0
    %417 = vmatmul.mubr.bf16.gmra.mrb[0].mxu0 %v352
    %v418 = vpop.f32.mrb[0].mxu0
    %v419 = vadd.f32 %v346, %v418
    %v420 = vpop.f32.mrb[0].mxu0
    %v421 = vpop.f32.mrb[0].mxu0
    %v422 = vadd.f32 %v346, %v421
    %v423 = vpop.f32.mrb[0].mxu0
    %424 = vmatprep.mubr.bf16.mxu0 0
    %425 = vmatmul.mubr.bf16.gmra.mrb[0].mxu0 %v355
    %v426 = vpop.f32.mrb[0].mxu0
    %v427 = vadd.f32 %v346, %v426
    %v428 = vpop.f32.mrb[0].mxu0
    %v429 = vpop.f32.mrb[0].mxu0
    %v430 = vadd.f32 %v346, %v429
    %v431 = vpop.f32.mrb[0].mxu0
    %432 = vmatprep.mubr.bf16.mxu0 0
    %433 = vmatmul.mubr.bf16.gmra.mrb[0].mxu0 %v358
    %v434 = vpop.f32.mrb[0].mxu0
    %v435 = vadd.f32 %v346, %v434
    %v436 = vpop.f32.mrb[0].mxu0
    %v437 = vpop.f32.mrb[0].mxu0
    %v438 = vadd.f32 %v346, %v437
    %v439 = vpop.f32.mrb[0].mxu0
    %440 = vmatprep.mubr.bf16.mxu0 0
    %441 = vmatmul.mubr.bf16.gmra.mrb[0].mxu0 %v361
    %v442 = vpop.f32.mrb[0].mxu0
    %v443 = vadd.f32 %v346, %v442
    %v444 = vpop.f32.mrb[0].mxu0
    %v445 = vpop.f32.mrb[0].mxu0
    %v446 = vadd.f32 %v346, %v445
    %v447 = vpop.f32.mrb[0].mxu0
    %448 = vmatprep.mubr.bf16.mxu0 0
    %449 = vmatmul.mubr.bf16.gmra.mrb[0].mxu0 %v364
    %v450 = vpop.f32.mrb[0].mxu0
    %v451 = vadd.f32 %v346, %v450
    %v452 = vpop.f32.mrb[0].mxu0
    %v453 = vpop.f32.mrb[0].mxu0
    %v454 = vadd.f32 %v346, %v453
    %v455 = vpop.f32.mrb[0].mxu0
    %456 = vmatprep.mubr.bf16.mxu0 0
    %457 = vmatmul.mubr.bf16.gmra.mrb[0].mxu0 %v367
    %v458 = vpop.f32.mrb[0].mxu0
    %v459 = vadd.f32 %v346, %v458
    %v460 = vpop.f32.mrb[0].mxu0
    %v461 = vpop.f32.mrb[0].mxu0
    %v462 = vadd.f32 %v346, %v461
    %v463 = vpop.f32.mrb[0].mxu0
    %464 = vmatprep.mubr.bf16.mxu0 0
    %465 = vmatmul.mubr.bf16.gmra.mrb[0].mxu0 %v370
    %v466 = vpop.f32.mrb[0].mxu0
    %v467 = vadd.f32 %v346, %v466
    %v468 = vpop.f32.mrb[0].mxu0
    %v469 = vpop.f32.mrb[0].mxu0
    %v470 = vadd.f32 %v346, %v469
    %v471 = vpop.f32.mrb[0].mxu0
    %472 = vdwg.mxu0
    %v473 = vmax.f32 %v411, 0.0
    %v474 = vmax.f32 %v414, 0.0
    %v475 = vmax.f32 %v419, 0.0
    %v476 = vmax.f32 %v422, 0.0
    %v477 = vmax.f32 %v427, 0.0
    %v478 = vmax.f32 %v430, 0.0
    %v479 = vmax.f32 %v435, 0.0
    %v480 = vmax.f32 %v438, 0.0
    %v481 = vmax.f32 %v443, 0.0
    %v482 = vmax.f32 %v446, 0.0
    %v483 = vmax.f32 %v451, 0.0
    %v484 = vmax.f32 %v454, 0.0
    %v485 = vmax.f32 %v459, 0.0
    %v486 = vmax.f32 %v462, 0.0
    %v487 = vmax.f32 %v467, 0.0
    %v488 = vmax.f32 %v470, 0.0
    %v489 = vpack.c.bf16 %v474, %v473
    %v490 = vpack.c.bf16 %v476, %v475
    %v491 = vpack.c.bf16 %v478, %v477
    %v492 = vpack.c.bf16 %v480, %v479
    %v493 = vpack.c.bf16 %v482, %v481
    %v494 = vpack.c.bf16 %v484, %v483
    %v495 = vpack.c.bf16 %v486, %v485
    %v496 = vpack.c.bf16 %v488, %v487
    %v505 = vunpack.c.l.b16 %v489
    %v506 = vunpack.c.h.b16 %v489
    %v507 = vunpack.c.l.b16 %v490
    %v508 = vunpack.c.h.b16 %v490
    %v509 = vunpack.c.l.b16 %v491
    %v510 = vunpack.c.h.b16 %v491
    %v511 = vunpack.c.l.b16 %v492
    %v512 = vunpack.c.h.b16 %v492
    %v513 = vunpack.c.l.b16 %v493
    %v514 = vunpack.c.h.b16 %v493
    %v515 = vunpack.c.l.b16 %v494
    %v516 = vunpack.c.h.b16 %v494
    %v517 = vunpack.c.l.b16 %v495
    %v518 = vunpack.c.h.b16 %v495
    %v519 = vunpack.c.l.b16 %v496
    %v520 = vunpack.c.h.b16 %v496
    %v521 = vpack.c.b16 %v505, %v505
    %v522 = vpack.c.b16 %v506, %v506
    %v523 = vpack.c.b16 %v507, %v507
    %v524 = vpack.c.b16 %v508, %v508
    %v525 = vpack.c.b16 %v509, %v509
    %v526 = vpack.c.b16 %v510, %v510
    %v527 = vpack.c.b16 %v511, %v511
    %v528 = vpack.c.b16 %v512, %v512
    %v529 = vpack.c.b16 %v513, %v513
    %v530 = vpack.c.b16 %v514, %v514
    %v531 = vpack.c.b16 %v515, %v515
    %v532 = vpack.c.b16 %v516, %v516
    %v533 = vpack.c.b16 %v517, %v517
    %v534 = vpack.c.b16 %v518, %v518
    %v535 = vpack.c.b16 %v519, %v519
    %v536 = vpack.c.b16 %v520, %v520
    %vm553 = vcmask 257024
    %554 = vst.msk [vmem:[%s4] sm:$0xf] %vm553, %v521
    %555 = vst.msk [vmem:[%s4 + $0x4] sm:$0xf] %vm553, %v522
    %556 = vst.msk [vmem:[%s4 + $0x8] sm:$0xf] %vm553, %v523
    %557 = vst.msk [vmem:[%s4 + $0xc] sm:$0xf] %vm553, %v524
    %558 = vst.msk [vmem:[%s4 + $0x10] sm:$0xf] %vm553, %v525
    %559 = vst.msk [vmem:[%s4 + $0x14] sm:$0xf] %vm553, %v526
    %560 = vst.msk [vmem:[%s4 + $0x18] sm:$0xf] %vm553, %v527
    %561 = vst.msk [vmem:[%s4 + $0x1c] sm:$0xf] %vm553, %v528
    %562 = vst.msk [vmem:[%s4 + $0x20] sm:$0xf] %vm553, %v529
    %563 = vst.msk [vmem:[%s4 + $0x24] sm:$0xf] %vm553, %v530
    %564 = vst.msk [vmem:[%s4 + $0x28] sm:$0xf] %vm553, %v531
    %565 = vst.msk [vmem:[%s4 + $0x2c] sm:$0xf] %vm553, %v532
    %566 = vst.msk [vmem:[%s4 + $0x30] sm:$0xf] %vm553, %v533
    %567 = vst.msk [vmem:[%s4 + $0x34] sm:$0xf] %vm553, %v534
    %568 = vst.msk [vmem:[%s4 + $0x38] sm:$0xf] %vm553, %v535
    %569 = vst.msk [vmem:[%s4 + $0x3c] sm:$0xf] %vm553, %v536
  $region25: #{tpu_custom_call.1} parent=0 // pred_fallthru
    _
  // Predicated region
  $region26: #{tpu_custom_call.1} parent=0 // pred_check
    _
  $region27: #{tpu_custom_call.1} parent=0 // pred_check_branch
    %571 = sbr.rel (0) target = $region29
  $region28: #{tpu_custom_call.1} parent=0 // pred_region
    _
  $region29: #{tpu_custom_call.1} parent=0 // pred_fallthru
    _
  // Predicated region
  $region30: #{tpu_custom_call.1} parent=0 // pred_check
    _
  $region31: #{tpu_custom_call.1} parent=0 // pred_check_branch
    %573 = sbr.rel (0) target = $region33
  $region32: #{tpu_custom_call.1} parent=0 // pred_region
    _
  $region33: #{tpu_custom_call.1} parent=0 // pred_fallthru
    _

</llo_original>
